<compile_context>
chip_gen: v7x
topology: tpu7x:2x2x1
jax: 0.10.0
libtpu: 0.0.40
codegen_flags: <defaults>
</compile_context>

<pallas_src>
import functools

import jax
import jax.numpy as jnp
from jax.experimental import pallas as pl
from jax.experimental.pallas import tpu as pltpu

WL, FL = 8, 4
BN_EPS = 1e-5
LANE = 128  # pad feature dims to the vreg lane width


def _pad_to(n, m):
    return ((n + m - 1) // m) * m


# ----------------------------- parameter setup -----------------------------

def fp_quant(x, wl=WL, fl=FL):
    """qtorch fixed_point_quantize, rounding='nearest' (half away from zero)."""
    scale = 2.0 ** fl
    lo = -(2.0 ** (wl - fl - 1))
    hi = 2.0 ** (wl - fl - 1) - 2.0 ** (-fl)
    r = jnp.sign(x) * jnp.floor(jnp.abs(x) * scale + 0.5) / scale
    return jnp.clip(r, lo, hi)


def init_linear(key, fan_in, fan_out, pad_in, pad_out):
    kw, kb = jax.random.split(key)
    bound = 1.0 / jnp.sqrt(fan_in)
    w = fp_quant(jax.random.uniform(kw, (fan_in, fan_out), jnp.float32, -bound, bound))
    b = fp_quant(jax.random.uniform(kb, (1, fan_out), jnp.float32, -bound, bound))
    # zero-pad to lane-dense shapes; padded rows/cols are exactly 0
    w_p = jnp.zeros((pad_in, pad_out), jnp.float32).at[:fan_in, :fan_out].set(w)
    b_p = jnp.zeros((1, pad_out), jnp.float32).at[:, :fan_out].set(b)
    # weights feed the MXU: the 8-bit fixed-point grid is exact in bf16
    return w_p.astype(jnp.bfloat16), b_p


def init_bn(dim, pad_dim):
    # fresh BatchNorm1d: gamma=1, beta=0 (quantized); padding gamma=0 keeps
    # padded feature columns identically zero.
    g = jnp.zeros((1, pad_dim), jnp.float32).at[:, :dim].set(
        fp_quant(jnp.ones((1, dim), jnp.float32)))
    b = jnp.zeros((1, pad_dim), jnp.float32)
    return g, b


def init_params(key, emb_dim, hidden_dim, num_layers):
    """Build the two stacked parameter arrays consumed by the kernel.

    w_stack: (2L, P, P) bf16, layer i uses [2i]=W1, [2i+1]=W2.
    v_stack: (4L, 1, P) f32,  layer i uses
        [4i]=gamma1, [4i+1]=beta1,
        [4i+2]=outer-BN gamma (non-last) / b2 (last layer),
        [4i+3]=outer-BN beta  (non-last) / zeros (last layer).
    Linear biases that cancel inside training-mode BN (b1 always, b2 for
    non-last layers) are not stored.
    """
    assert emb_dim == hidden_dim
    d_pad = _pad_to(emb_dim, LANE)
    h_pad = _pad_to(2 * emb_dim, LANE)
    assert d_pad == h_pad, "single (2L,P,P) weight stack requires equal padded dims"
    p = d_pad
    w_stack = jnp.zeros((2 * num_layers, p, p), jnp.bfloat16)
    v_stack = jnp.zeros((4 * num_layers, 1, p), jnp.float32)
    for i in range(num_layers):
        key, k1, k2 = jax.random.split(key, 3)
        w1, _b1 = init_linear(k1, emb_dim, 2 * emb_dim, p, p)  # b1 cancels in BN1
        g1, be1 = init_bn(2 * emb_dim, p)
        w2, b2 = init_linear(k2, 2 * emb_dim, emb_dim, p, p)
        w_stack = w_stack.at[2 * i].set(w1).at[2 * i + 1].set(w2)
        v_stack = v_stack.at[4 * i + 0].set(g1).at[4 * i + 1].set(be1)
        if i < num_layers - 1:
            go, bo = init_bn(hidden_dim, p)  # outer BN absorbs b2 -> drop it
            v_stack = v_stack.at[4 * i + 2].set(go).at[4 * i + 3].set(bo)
        else:
            v_stack = v_stack.at[4 * i + 2].set(b2)  # last layer keeps its bias
    return w_stack, v_stack


# ------------------------------ Pallas kernel -------------------------------

def _bn_scale_shift(z, gamma, beta):
    """BatchNorm1d (training mode, biased var) as one-pass scale/shift."""
    inv_n = 1.0 / z.shape[0]
    mu = jnp.sum(z, axis=0, keepdims=True) * inv_n
    var = jnp.maximum(jnp.sum(z * z, axis=0, keepdims=True) * inv_n - mu * mu, 0.0)
    scale = gamma * jax.lax.rsqrt(var + BN_EPS)
    return z * scale + (beta - mu * scale)


def make_fused_kernel(num_layers, d_real):
    """One grid step = one graph; all GIN layers fused, activations in vregs."""

    def kernel(adj_ref, x_ref, w_ref, v_ref, o_ref):
        adj = adj_ref[0]           # (N, N) bf16, already adj + (1+eps)*I
        x0 = x_ref[0]              # (N, D_pad) bf16

        def gin_layer(i, x_bf):
            # GINConv aggregation (self-term folded into adj_hat)
            h = jnp.dot(adj, x_bf, preferred_element_type=jnp.float32)
            # MLP: QLinear (b1 cancels in BN1) -> QBatchNorm1d -> ReLU -> QLinear
            z = jnp.dot(h.astype(jnp.bfloat16), w_ref[2 * i],
                        preferred_element_type=jnp.float32)
            z = jnp.maximum(_bn_scale_shift(z, v_ref[4 * i], v_ref[4 * i + 1]), 0.0)
            return jnp.dot(z.astype(jnp.bfloat16), w_ref[2 * i + 1],
                           preferred_element_type=jnp.float32)

        def body(i, x_bf):
            y = gin_layer(i, x_bf)
            # outer QBatchNorm1d (absorbs b2) + ReLU; dropout(p=0) = identity
            xn = jnp.maximum(_bn_scale_shift(y, v_ref[4 * i + 2], v_ref[4 * i + 3]),
                             0.0)
            return xn.astype(jnp.bfloat16)

        # Layers 0..L-2: fori_loop bounds the live weight set to one layer.
        x_last = jax.lax.fori_loop(0, num_layers - 1, body, x0)

        # Final GINConv (static indices); its second Linear keeps the bias.
        li = num_layers - 1
        y = gin_layer(li, x_last) + v_ref[4 * li + 2]

        # LogSoftmax over the real feature columns only (padding masked out)
        col = jax.lax.broadcasted_iota(jnp.int32, y.shape, 1)
        ym = jnp.where(col < d_real, y, -jnp.inf)
        m = jnp.max(ym, axis=1, keepdims=True)
        s = jnp.sum(jnp.exp(ym - m), axis=1, keepdims=True)
        o_ref[0] = y - (jnp.log(s) + m)

    return kernel


@functools.partial(jax.jit, static_argnames=("num_layers", "emb_dim"))
def qgin_fp_forward(x_pad, adj_hat, w_stack, v_stack, num_layers, emb_dim):
    b, n, d_pad = x_pad.shape
    kernel = make_fused_kernel(num_layers, emb_dim)

    # Advisory cost hint so XLA can overlap this micro-call with neighbors.
    flops = b * num_layers * (2 * n * n * d_pad + 4 * n * d_pad * d_pad)
    transcendentals = b * (n * d_pad + (2 * num_layers - 1) * d_pad)
    bytes_accessed = (b * n * n * 2 + b * n * d_pad * 2
                      + 2 * num_layers * d_pad * d_pad * 2
                      + 4 * num_layers * d_pad * 4
                      + b * n * d_pad * 4)

    # Small-graph regime: each graph's (N,N)+(N,D_pad) block plus the whole
    # parameter stack (~200 KiB) is far under the 32 MiB scoped-VMEM default
    # on any chip (incl. v7x's 64 MiB physical).  For large N, raise
    # vmem_limit_bytes and tile adj over node-row panels instead.
    out = pl.pallas_call(
        kernel,
        out_shape=jax.ShapeDtypeStruct((b, n, d_pad), jnp.float32),
        grid_spec=pltpu.PrefetchScalarGridSpec(
            num_scalar_prefetch=0,
            grid=(b,),
            in_specs=[
                # per-graph blocks: pipelined (double-buffered) across the grid
                pl.BlockSpec((1, n, n), lambda g: (g, 0, 0)),
                pl.BlockSpec((1, n, d_pad), lambda g: (g, 0, 0)),
                # parameter stacks: constant block index -> DMA'd once, resident
                pl.BlockSpec((2 * num_layers, d_pad, d_pad), lambda g: (0, 0, 0)),
                pl.BlockSpec((4 * num_layers, 1, d_pad), lambda g: (0, 0, 0)),
            ],
            out_specs=pl.BlockSpec((1, n, d_pad), lambda g: (g, 0, 0)),
        ),
        compiler_params=pltpu.CompilerParams(
            dimension_semantics=("parallel",)),
        cost_estimate=pl.CostEstimate(
            flops=int(flops),
            transcendentals=int(transcendentals),
            bytes_accessed=int(bytes_accessed)),
    )(adj_hat, x_pad, w_stack, v_stack)
    return out[:, :, :emb_dim]


# ---------------------------------- main ------------------------------------

if __name__ == "__main__":
    B = 8             # graphs per call: grid axis, "parallel" across v7x cores
    N = 16            # nodes per graph
    EMB_DIM = 32      # emb_dim == hidden_dim
    HIDDEN_DIM = 32
    NUM_LAYERS = 3
    DROPOUT = 0.0     # training-mode dropout with p=0 -> identity

    key = jax.random.PRNGKey(0)
    kx, ka, kp = jax.random.split(key, 3)

    x = jax.random.normal(kx, (B, N, EMB_DIM), jnp.float32)

    # random undirected adjacency per graph (dense 0/1, no self-loops)
    a = (jax.random.uniform(ka, (B, N, N)) < 0.3).astype(jnp.float32)
    adj = jnp.clip(a + jnp.swapaxes(a, 1, 2), 0.0, 1.0) * \
        (1.0 - jnp.eye(N, dtype=jnp.float32))
    # Fold the GIN self-term in once: adj_hat = adj + (1+eps)*I, eps = 0.
    # Entries are 0/1 -> exact in bf16.
    adj_hat = (adj + jnp.eye(N, dtype=jnp.float32)).astype(jnp.bfloat16)

    # lane-dense node features: zero-pad D=32 -> 128; bf16 (MXU operand only)
    D_PAD = _pad_to(EMB_DIM, LANE)
    x_pad = jnp.zeros((B, N, D_PAD), jnp.float32)
    x_pad = x_pad.at[:, :, :EMB_DIM].set(x).astype(jnp.bfloat16)

    w_stack, v_stack = init_params(kp, EMB_DIM, HIDDEN_DIM, NUM_LAYERS)

    out = qgin_fp_forward(x_pad, adj_hat, w_stack, v_stack, NUM_LAYERS, EMB_DIM)
    out = jax.block_until_ready(out)

    assert out.shape == (B, N, EMB_DIM)
    assert bool(jnp.all(jnp.isfinite(out)))
    # log_softmax rows must (log-)sum to 1
    assert bool(jnp.allclose(jnp.sum(jnp.exp(out), axis=-1), 1.0, atol=1e-4))

    print("KERNEL_OK")
</pallas_src>

<mosaic_0001>
module attributes {stable_mosaic.version = 11 : i64} {
  func.func @kernel(%arg0: i32, %arg1: memref<1x16x16xbf16, #tpu.memory_space<vmem>>, %arg2: memref<1x16x128xbf16, #tpu.memory_space<vmem>>, %arg3: memref<6x128x128xbf16, #tpu.memory_space<vmem>>, %arg4: memref<12x1x128xf32, #tpu.memory_space<vmem>>, %arg5: memref<1x16x128xf32, #tpu.memory_space<vmem>>) attributes {dimension_semantics = [#tpu.dimension_semantics<parallel>], iteration_bounds = array<i64: 8>, scalar_prefetch = 0 : i64, scratch_operands = 0 : i64, tpu.core_type = #tpu.core_type<tc>, window_params = [{transform_indices = @transform_0, window_bounds = array<i64: 1, 16, 16>}, {transform_indices = @transform_1, window_bounds = array<i64: 1, 16, 128>}, {pipeline_mode = #tpu.pipeline_mode<synchronous>, transform_indices = @transform_2, window_bounds = array<i64: 6, 128, 128>}, {pipeline_mode = #tpu.pipeline_mode<synchronous>, transform_indices = @transform_3, window_bounds = array<i64: 12, 1, 128>}, {transform_indices = @transform_4, window_bounds = array<i64: 1, 16, 128>}]} {
    %c0 = arith.constant 0 : index
    %c0_0 = arith.constant 0 : index
    %c0_1 = arith.constant 0 : index
    %0 = vector.load %arg1[%c0, %c0_0, %c0_1] : memref<1x16x16xbf16, #tpu.memory_space<vmem>>, vector<1x16x16xbf16>
    %1 = vector.shape_cast %0 : vector<1x16x16xbf16> to vector<16x16xbf16>
    %c0_2 = arith.constant 0 : index
    %c0_3 = arith.constant 0 : index
    %c0_4 = arith.constant 0 : index
    %2 = vector.load %arg2[%c0_2, %c0_3, %c0_4] : memref<1x16x128xbf16, #tpu.memory_space<vmem>>, vector<1x16x128xbf16>
    %3 = vector.shape_cast %2 : vector<1x16x128xbf16> to vector<16x128xbf16>
    %c0_i32 = arith.constant 0 : i32
    %c2_i32 = arith.constant 2 : i32
    %4 = arith.addi %c0_i32, %c2_i32 : i32
    %c1_i32 = arith.constant 1 : i32
    %5 = scf.for %arg6 = %c0_i32 to %4 step %c1_i32 iter_args(%arg7 = %3) -> (vector<16x128xbf16>)  : i32 {
      %cst_31 = arith.constant dense<0.000000e+00> : vector<16x128xf32>
      %67 = tpu.matmul %1, %arg7, %cst_31 {dimension_numbers = #tpu.dot_dimension_numbers<[1], [0], [0], [1], [0, 0, 1, 1], [], []>} : vector<16x16xbf16>, vector<16x128xbf16>, vector<16x128xf32> -> vector<16x128xf32>
      %68 = arith.truncf %67 : vector<16x128xf32> to vector<16x128xbf16>
      %c2_i32_32 = arith.constant 2 : i32
      %69 = arith.muli %c2_i32_32, %arg6 : i32
      %70 = arith.index_cast %69 : i32 to index
      %c0_33 = arith.constant 0 : index
      %c0_34 = arith.constant 0 : index
      %71 = vector.load %arg3[%70, %c0_33, %c0_34] : memref<6x128x128xbf16, #tpu.memory_space<vmem>>, vector<1x128x128xbf16>
      %72 = vector.shape_cast %71 : vector<1x128x128xbf16> to vector<128x128xbf16>
      %cst_35 = arith.constant dense<0.000000e+00> : vector<16x128xf32>
      %73 = tpu.matmul %68, %72, %cst_35 {dimension_numbers = #tpu.dot_dimension_numbers<[1], [0], [0], [1], [0, 0, 1, 1], [], []>} : vector<16x128xbf16>, vector<128x128xbf16>, vector<16x128xf32> -> vector<16x128xf32>
      %c4_i32 = arith.constant 4 : i32
      %74 = arith.muli %c4_i32, %arg6 : i32
      %75 = arith.index_cast %74 : i32 to index
      %c0_36 = arith.constant 0 : index
      %c0_37 = arith.constant 0 : index
      %76 = vector.load %arg4[%75, %c0_36, %c0_37] : memref<12x1x128xf32, #tpu.memory_space<vmem>>, vector<1x1x128xf32>
      %77 = vector.shape_cast %76 : vector<1x1x128xf32> to vector<1x128xf32>
      %c4_i32_38 = arith.constant 4 : i32
      %78 = arith.muli %c4_i32_38, %arg6 : i32
      %c1_i32_39 = arith.constant 1 : i32
      %79 = arith.addi %78, %c1_i32_39 : i32
      %80 = arith.index_cast %79 : i32 to index
      %c0_40 = arith.constant 0 : index
      %c0_41 = arith.constant 0 : index
      %81 = vector.load %arg4[%80, %c0_40, %c0_41] : memref<12x1x128xf32, #tpu.memory_space<vmem>>, vector<1x1x128xf32>
      %82 = vector.shape_cast %81 : vector<1x1x128xf32> to vector<1x128xf32>
      %cst_42 = arith.constant dense<0.000000e+00> : vector<128xf32>
      %83 = vector.multi_reduction <add>, %73, %cst_42 [0] : vector<16x128xf32> to vector<128xf32>
      %84 = vector.shape_cast %83 : vector<128xf32> to vector<1x128xf32>
      %cst_43 = arith.constant 6.250000e-02 : f32
      %85 = vector.broadcast %cst_43 : f32 to vector<1x128xf32>
      %86 = arith.mulf %84, %85 : vector<1x128xf32>
      %87 = arith.mulf %73, %73 : vector<16x128xf32>
      %cst_44 = arith.constant dense<0.000000e+00> : vector<128xf32>
      %88 = vector.multi_reduction <add>, %87, %cst_44 [0] : vector<16x128xf32> to vector<128xf32>
      %89 = vector.shape_cast %88 : vector<128xf32> to vector<1x128xf32>
      %cst_45 = arith.constant 6.250000e-02 : f32
      %90 = vector.broadcast %cst_45 : f32 to vector<1x128xf32>
      %91 = arith.mulf %89, %90 : vector<1x128xf32>
      %92 = arith.mulf %86, %86 : vector<1x128xf32>
      %93 = arith.subf %91, %92 : vector<1x128xf32>
      %cst_46 = arith.constant 0.000000e+00 : f32
      %94 = vector.broadcast %cst_46 : f32 to vector<1x128xf32>
      %95 = arith.maximumf %93, %94 : vector<1x128xf32>
      %cst_47 = arith.constant 9.99999974E-6 : f32
      %96 = vector.broadcast %cst_47 : f32 to vector<1x128xf32>
      %97 = arith.addf %95, %96 : vector<1x128xf32>
      %98 = math.rsqrt %97 : vector<1x128xf32>
      %99 = arith.mulf %77, %98 : vector<1x128xf32>
      %100 = vector.broadcast %99 : vector<1x128xf32> to vector<16x128xf32>
      %101 = arith.mulf %73, %100 : vector<16x128xf32>
      %102 = arith.mulf %86, %99 : vector<1x128xf32>
      %103 = arith.subf %82, %102 : vector<1x128xf32>
      %104 = vector.broadcast %103 : vector<1x128xf32> to vector<16x128xf32>
      %105 = arith.addf %101, %104 : vector<16x128xf32>
      %cst_48 = arith.constant 0.000000e+00 : f32
      %106 = vector.broadcast %cst_48 : f32 to vector<16x128xf32>
      %107 = arith.maximumf %105, %106 : vector<16x128xf32>
      %108 = arith.truncf %107 : vector<16x128xf32> to vector<16x128xbf16>
      %c2_i32_49 = arith.constant 2 : i32
      %109 = arith.muli %c2_i32_49, %arg6 : i32
      %c1_i32_50 = arith.constant 1 : i32
      %110 = arith.addi %109, %c1_i32_50 : i32
      %111 = arith.index_cast %110 : i32 to index
      %c0_51 = arith.constant 0 : index
      %c0_52 = arith.constant 0 : index
      %112 = vector.load %arg3[%111, %c0_51, %c0_52] : memref<6x128x128xbf16, #tpu.memory_space<vmem>>, vector<1x128x128xbf16>
      %113 = vector.shape_cast %112 : vector<1x128x128xbf16> to vector<128x128xbf16>
      %cst_53 = arith.constant dense<0.000000e+00> : vector<16x128xf32>
      %114 = tpu.matmul %108, %113, %cst_53 {dimension_numbers = #tpu.dot_dimension_numbers<[1], [0], [0], [1], [0, 0, 1, 1], [], []>} : vector<16x128xbf16>, vector<128x128xbf16>, vector<16x128xf32> -> vector<16x128xf32>
      %c4_i32_54 = arith.constant 4 : i32
      %115 = arith.muli %c4_i32_54, %arg6 : i32
      %c2_i32_55 = arith.constant 2 : i32
      %116 = arith.addi %115, %c2_i32_55 : i32
      %117 = arith.index_cast %116 : i32 to index
      %c0_56 = arith.constant 0 : index
      %c0_57 = arith.constant 0 : index
      %118 = vector.load %arg4[%117, %c0_56, %c0_57] : memref<12x1x128xf32, #tpu.memory_space<vmem>>, vector<1x1x128xf32>
      %119 = vector.shape_cast %118 : vector<1x1x128xf32> to vector<1x128xf32>
      %c4_i32_58 = arith.constant 4 : i32
      %120 = arith.muli %c4_i32_58, %arg6 : i32
      %c3_i32 = arith.constant 3 : i32
      %121 = arith.addi %120, %c3_i32 : i32
      %122 = arith.index_cast %121 : i32 to index
      %c0_59 = arith.constant 0 : index
      %c0_60 = arith.constant 0 : index
      %123 = vector.load %arg4[%122, %c0_59, %c0_60] : memref<12x1x128xf32, #tpu.memory_space<vmem>>, vector<1x1x128xf32>
      %124 = vector.shape_cast %123 : vector<1x1x128xf32> to vector<1x128xf32>
      %cst_61 = arith.constant dense<0.000000e+00> : vector<128xf32>
      %125 = vector.multi_reduction <add>, %114, %cst_61 [0] : vector<16x128xf32> to vector<128xf32>
      %126 = vector.shape_cast %125 : vector<128xf32> to vector<1x128xf32>
      %cst_62 = arith.constant 6.250000e-02 : f32
      %127 = vector.broadcast %cst_62 : f32 to vector<1x128xf32>
      %128 = arith.mulf %126, %127 : vector<1x128xf32>
      %129 = arith.mulf %114, %114 : vector<16x128xf32>
      %cst_63 = arith.constant dense<0.000000e+00> : vector<128xf32>
      %130 = vector.multi_reduction <add>, %129, %cst_63 [0] : vector<16x128xf32> to vector<128xf32>
      %131 = vector.shape_cast %130 : vector<128xf32> to vector<1x128xf32>
      %cst_64 = arith.constant 6.250000e-02 : f32
      %132 = vector.broadcast %cst_64 : f32 to vector<1x128xf32>
      %133 = arith.mulf %131, %132 : vector<1x128xf32>
      %134 = arith.mulf %128, %128 : vector<1x128xf32>
      %135 = arith.subf %133, %134 : vector<1x128xf32>
      %cst_65 = arith.constant 0.000000e+00 : f32
      %136 = vector.broadcast %cst_65 : f32 to vector<1x128xf32>
      %137 = arith.maximumf %135, %136 : vector<1x128xf32>
      %cst_66 = arith.constant 9.99999974E-6 : f32
      %138 = vector.broadcast %cst_66 : f32 to vector<1x128xf32>
      %139 = arith.addf %137, %138 : vector<1x128xf32>
      %140 = math.rsqrt %139 : vector<1x128xf32>
      %141 = arith.mulf %119, %140 : vector<1x128xf32>
      %142 = vector.broadcast %141 : vector<1x128xf32> to vector<16x128xf32>
      %143 = arith.mulf %114, %142 : vector<16x128xf32>
      %144 = arith.mulf %128, %141 : vector<1x128xf32>
      %145 = arith.subf %124, %144 : vector<1x128xf32>
      %146 = vector.broadcast %145 : vector<1x128xf32> to vector<16x128xf32>
      %147 = arith.addf %143, %146 : vector<16x128xf32>
      %cst_67 = arith.constant 0.000000e+00 : f32
      %148 = vector.broadcast %cst_67 : f32 to vector<16x128xf32>
      %149 = arith.maximumf %147, %148 : vector<16x128xf32>
      %150 = arith.truncf %149 : vector<16x128xf32> to vector<16x128xbf16>
      scf.yield %150 : vector<16x128xbf16>
    }
    %c2_i32_5 = arith.constant 2 : i32
    %cst = arith.constant dense<0.000000e+00> : vector<16x128xf32>
    %6 = tpu.matmul %1, %5, %cst {dimension_numbers = #tpu.dot_dimension_numbers<[1], [0], [0], [1], [0, 0, 1, 1], [], []>} : vector<16x16xbf16>, vector<16x128xbf16>, vector<16x128xf32> -> vector<16x128xf32>
    %7 = arith.truncf %6 : vector<16x128xf32> to vector<16x128xbf16>
    %c4 = arith.constant 4 : index
    %c0_6 = arith.constant 0 : index
    %c0_7 = arith.constant 0 : index
    %8 = vector.load %arg3[%c4, %c0_6, %c0_7] : memref<6x128x128xbf16, #tpu.memory_space<vmem>>, vector<1x128x128xbf16>
    %9 = vector.shape_cast %8 : vector<1x128x128xbf16> to vector<128x128xbf16>
    %cst_8 = arith.constant dense<0.000000e+00> : vector<16x128xf32>
    %10 = tpu.matmul %7, %9, %cst_8 {dimension_numbers = #tpu.dot_dimension_numbers<[1], [0], [0], [1], [0, 0, 1, 1], [], []>} : vector<16x128xbf16>, vector<128x128xbf16>, vector<16x128xf32> -> vector<16x128xf32>
    %c8 = arith.constant 8 : index
    %c0_9 = arith.constant 0 : index
    %c0_10 = arith.constant 0 : index
    %11 = vector.load %arg4[%c8, %c0_9, %c0_10] : memref<12x1x128xf32, #tpu.memory_space<vmem>>, vector<1x1x128xf32>
    %12 = vector.shape_cast %11 : vector<1x1x128xf32> to vector<1x128xf32>
    %c9 = arith.constant 9 : index
    %c0_11 = arith.constant 0 : index
    %c0_12 = arith.constant 0 : index
    %13 = vector.load %arg4[%c9, %c0_11, %c0_12] : memref<12x1x128xf32, #tpu.memory_space<vmem>>, vector<1x1x128xf32>
    %14 = vector.shape_cast %13 : vector<1x1x128xf32> to vector<1x128xf32>
    %cst_13 = arith.constant dense<0.000000e+00> : vector<128xf32>
    %15 = vector.multi_reduction <add>, %10, %cst_13 [0] : vector<16x128xf32> to vector<128xf32>
    %16 = vector.shape_cast %15 : vector<128xf32> to vector<1x128xf32>
    %cst_14 = arith.constant 6.250000e-02 : f32
    %17 = vector.broadcast %cst_14 : f32 to vector<1x128xf32>
    %18 = arith.mulf %16, %17 : vector<1x128xf32>
    %19 = arith.mulf %10, %10 : vector<16x128xf32>
    %cst_15 = arith.constant dense<0.000000e+00> : vector<128xf32>
    %20 = vector.multi_reduction <add>, %19, %cst_15 [0] : vector<16x128xf32> to vector<128xf32>
    %21 = vector.shape_cast %20 : vector<128xf32> to vector<1x128xf32>
    %cst_16 = arith.constant 6.250000e-02 : f32
    %22 = vector.broadcast %cst_16 : f32 to vector<1x128xf32>
    %23 = arith.mulf %21, %22 : vector<1x128xf32>
    %24 = arith.mulf %18, %18 : vector<1x128xf32>
    %25 = arith.subf %23, %24 : vector<1x128xf32>
    %cst_17 = arith.constant 0.000000e+00 : f32
    %26 = vector.broadcast %cst_17 : f32 to vector<1x128xf32>
    %27 = arith.maximumf %25, %26 : vector<1x128xf32>
    %cst_18 = arith.constant 9.99999974E-6 : f32
    %28 = vector.broadcast %cst_18 : f32 to vector<1x128xf32>
    %29 = arith.addf %27, %28 : vector<1x128xf32>
    %30 = math.rsqrt %29 : vector<1x128xf32>
    %31 = arith.mulf %12, %30 : vector<1x128xf32>
    %32 = vector.broadcast %31 : vector<1x128xf32> to vector<16x128xf32>
    %33 = arith.mulf %10, %32 : vector<16x128xf32>
    %34 = arith.mulf %18, %31 : vector<1x128xf32>
    %35 = arith.subf %14, %34 : vector<1x128xf32>
    %36 = vector.broadcast %35 : vector<1x128xf32> to vector<16x128xf32>
    %37 = arith.addf %33, %36 : vector<16x128xf32>
    %cst_19 = arith.constant 0.000000e+00 : f32
    %38 = vector.broadcast %cst_19 : f32 to vector<16x128xf32>
    %39 = arith.maximumf %37, %38 : vector<16x128xf32>
    %40 = arith.truncf %39 : vector<16x128xf32> to vector<16x128xbf16>
    %c5 = arith.constant 5 : index
    %c0_20 = arith.constant 0 : index
    %c0_21 = arith.constant 0 : index
    %41 = vector.load %arg3[%c5, %c0_20, %c0_21] : memref<6x128x128xbf16, #tpu.memory_space<vmem>>, vector<1x128x128xbf16>
    %42 = vector.shape_cast %41 : vector<1x128x128xbf16> to vector<128x128xbf16>
    %cst_22 = arith.constant dense<0.000000e+00> : vector<16x128xf32>
    %43 = tpu.matmul %40, %42, %cst_22 {dimension_numbers = #tpu.dot_dimension_numbers<[1], [0], [0], [1], [0, 0, 1, 1], [], []>} : vector<16x128xbf16>, vector<128x128xbf16>, vector<16x128xf32> -> vector<16x128xf32>
    %c10 = arith.constant 10 : index
    %c0_23 = arith.constant 0 : index
    %c0_24 = arith.constant 0 : index
    %44 = vector.load %arg4[%c10, %c0_23, %c0_24] : memref<12x1x128xf32, #tpu.memory_space<vmem>>, vector<1x1x128xf32>
    %45 = vector.shape_cast %44 : vector<1x1x128xf32> to vector<1x128xf32>
    %46 = vector.broadcast %45 : vector<1x128xf32> to vector<16x128xf32>
    %47 = arith.addf %43, %46 : vector<16x128xf32>
    %48 = tpu.iota {dimensions = array<i32: 1>} : vector<16x128xi32>
    %c32_i32 = arith.constant 32 : i32
    %49 = vector.broadcast %c32_i32 : i32 to vector<16x128xi32>
    %50 = arith.cmpi slt, %48, %49 : vector<16x128xi32>
    %cst_25 = arith.constant 0xFF800000 : f32
    %51 = vector.broadcast %cst_25 : f32 to vector<16x128xf32>
    %52 = arith.select %50, %47, %51 : vector<16x128xi1>, vector<16x128xf32>
    %cst_26 = arith.constant dense<0xFF800000> : vector<16xf32>
    %53 = vector.multi_reduction <maximumf>, %52, %cst_26 [1] : vector<16x128xf32> to vector<16xf32>
    %54 = vector.shape_cast %53 : vector<16xf32> to vector<16x1xf32>
    %55 = vector.broadcast %54 : vector<16x1xf32> to vector<16x128xf32>
    %56 = arith.subf %52, %55 : vector<16x128xf32>
    %57 = math.exp %56 : vector<16x128xf32>
    %cst_27 = arith.constant dense<0.000000e+00> : vector<16xf32>
    %58 = vector.multi_reduction <add>, %57, %cst_27 [1] : vector<16x128xf32> to vector<16xf32>
    %59 = vector.shape_cast %58 : vector<16xf32> to vector<16x1xf32>
    %60 = math.log %59 : vector<16x1xf32>
    %61 = arith.addf %60, %54 : vector<16x1xf32>
    %62 = vector.broadcast %61 : vector<16x1xf32> to vector<16x128xf32>
    %63 = arith.subf %47, %62 : vector<16x128xf32>
    %c0_28 = arith.constant 0 : index
    %c0_29 = arith.constant 0 : index
    %c0_30 = arith.constant 0 : index
    %64 = vector.load %arg5[%c0_28, %c0_29, %c0_30] : memref<1x16x128xf32, #tpu.memory_space<vmem>>, vector<1x16x128xf32>
    %65 = vector.shape_cast %64 : vector<1x16x128xf32> to vector<16x128xf32>
    %66 = vector.shape_cast %63 : vector<16x128xf32> to vector<1x16x128xf32>
    tpu.vector_store %arg5[%c0_28, %c0_29, %c0_30], %66 {strides = array<i32>} : memref<1x16x128xf32, #tpu.memory_space<vmem>>, vector<1x16x128xf32>,
    return
  }
  func.func @transform_0(%arg0: i32) -> (i32, i32, i32) {
    %c0_i32 = arith.constant 0 : i32
    %c0_i32_0 = arith.constant 0 : i32
    %c0_i32_1 = arith.constant 0 : i32
    return %arg0, %c0_i32, %c0_i32_0 : i32, i32, i32
  }
  func.func @transform_1(%arg0: i32) -> (i32, i32, i32) {
    %c0_i32 = arith.constant 0 : i32
    %c0_i32_0 = arith.constant 0 : i32
    %c0_i32_1 = arith.constant 0 : i32
    return %arg0, %c0_i32, %c0_i32_0 : i32, i32, i32
  }
  func.func @transform_2(%arg0: i32) -> (i32, i32, i32) {
    %c0_i32 = arith.constant 0 : i32
    %c0_i32_0 = arith.constant 0 : i32
    %c0_i32_1 = arith.constant 0 : i32
    %c0_i32_2 = arith.constant 0 : i32
    return %c0_i32, %c0_i32_0, %c0_i32_1 : i32, i32, i32
  }
  func.func @transform_3(%arg0: i32) -> (i32, i32, i32) {
    %c0_i32 = arith.constant 0 : i32
    %c0_i32_0 = arith.constant 0 : i32
    %c0_i32_1 = arith.constant 0 : i32
    %c0_i32_2 = arith.constant 0 : i32
    return %c0_i32, %c0_i32_0, %c0_i32_1 : i32, i32, i32
  }
  func.func @transform_4(%arg0: i32) -> (i32, i32, i32) {
    %c0_i32 = arith.constant 0 : i32
    %c0_i32_0 = arith.constant 0 : i32
    %c0_i32_1 = arith.constant 0 : i32
    return %arg0, %c0_i32, %c0_i32_0 : i32, i32, i32
  }
}

</mosaic_0001>

<llo_original>
// kernel: qgin_fp_forward.1
$region0: #{qgin_fp_forward.1}
  #allocation0 [shape = 'u32[]', space=smem, size = 0x4, offset = 0x4, fixed_abs, tag = 'smem constant byte address 0x4 - core index']
  #allocation1 [shape = 'u32[144,128]{1,0:T(1,128)}', space=vmem, size = 0x12000, scoped, tag = 'internal scratch']
  %s0 = inlined_call_operand.hbm [shape: bf16[8,16,16], index: 0, kind: input, shape index: {}]
  %s1 = inlined_call_operand.hbm [shape: bf16[8,16,128], index: 1, kind: input, shape index: {}]
  %s2 = inlined_call_operand.hbm [shape: bf16[6,128,128], index: 2, kind: input, shape index: {}]
  %s3 = inlined_call_operand.hbm [shape: f32[12,1,128], index: 3, kind: input, shape index: {}]
  %s4 = inlined_call_operand.hbm [shape: f32[8,16,128], index: 4, kind: output, shape index: {}]
  %s5 = sld [smem:[#allocation0]]
  $region72: #{qgin_fp_forward.1} parent=0
    _
  %s7 = ssub.s32 1, %s5
  %s8 = scalar_select 0, %s7, %s5
  $region1: #{qgin_fp_forward.1} parent=0
    #allocation2 [shape = 'u8[8192]{0}', space=vmem, size = 0x2000, scoped, tag = 'input window, operand 0']
    #allocation3 [shape = 's32[2]{0}', space=sflag, size = 0x8, scoped, tag = 'scoped memory for qgin_fp_forward.1']
    #allocation4 [shape = 's32[2]{0}', space=sflag, size = 0x8, scoped, tag = 'scoped memory for qgin_fp_forward.1']
    #allocation5 [shape = 'u8[8192]{0}', space=vmem, size = 0x2000, scoped, tag = 'input window, operand 1']
    #allocation6 [shape = 's32[2]{0}', space=sflag, size = 0x8, scoped, tag = 'scoped memory for qgin_fp_forward.1']
    #allocation7 [shape = 'u8[196608]{0}', space=vmem, size = 0x30000, scoped, tag = 'input window, operand 2, single buffered']
    #allocation8 [shape = 'u8[6144]{0}', space=vmem, size = 0x1800, scoped, tag = 'input window, operand 3, single buffered']
    #allocation9 [shape = 's32[1]{0}', space=sflag, size = 0x4, scoped, tag = 'scoped memory for qgin_fp_forward.1']
    #allocation10 [shape = 'u8[16384]{0}', space=vmem, size = 0x4000, scoped, tag = 'output window, operand 0']
    %9 = vsyncpa [#allocation3], 0
    %s10 = scalar_lea.sflag [#allocation3], 1
    %11 = vsyncpa %s10, 0
    %12 = vsyncpa [#allocation6], 0
    %s13 = scalar_lea.sflag [#allocation6], 1
    %14 = vsyncpa %s13, 0
    %15 = vsyncpa [#allocation9], 0
    %16 = vsyncpa [#allocation4], 0
    %s17 = scalar_lea.sflag [#allocation4], 1
    %18 = vsyncpa %s17, 0
    loop: start=0, step=1, limit=10
    $region2: #{qgin_fp_forward.1} parent=1 // loop_pre_header
      _
    $region3: #{qgin_fp_forward.1} parent=1 // loop_header
      %s20 = sphi 0, %s24
      %p21 = scmp.ge.s32.totalorder %s20, 10
      %s30 = sphi 0, %s32
      %s33 = sphi 0, %s30
      %s34 = sphi 0, %s33
      %s50 = sphi 0, %s34
      %s56 = sphi 0, %s58
      %s59 = sphi 0, %s56
      %s60 = sphi 0, %s59
      %s76 = sphi 0, %s60
      %s80 = sphi 0, %s80
      %s82 = sphi 0, %s80
      %s83 = sphi 0, %s82
      %s97 = sphi 0, %s83
      %s101 = sphi 0, %s101
      %s103 = sphi 0, %s101
      %s104 = sphi 0, %s103
      %s118 = sphi 0, %s104
      %s124 = sphi 0, %s126
      %s127 = sphi 0, %s124
      %s128 = sphi 0, %s127
      %s144 = sphi 0, %s128
    $region4: #{qgin_fp_forward.1} parent=1 // loop_header_branch
      %23 = sbr.rel (%p21) target = $region8
    $region5: #{qgin_fp_forward.1} parent=1 // loop_body
      %s25 = ssub.s32 %s20, 1
      %s26 = ssub.s32 %s20, 2
      %s27 = sadd.s32 %s20, 1
      %s28 = ssub.s32 %s20, %s27
      %p29 = scmp.eq.s32.totalorder %s28, 0
      %s31 = sadd.s32 %s30, 1
      %s32 = scalar_select %p29, %s30, %s31
      %p35 = pneg %p29
      %p36 = scmp.eq.s32.totalorder %s20, 7
      %p37 = por %p35, %p36
      %p38 = scmp.ne.s32.totalorder %s30, %s33
      %p39 = scmp.eq.s32.totalorder %s20, 0
      %p40 = por %p38, %p39
      %p41 = scmp.ne.s32.totalorder %s30, %s33
      %p42 = scmp.eq.s32.totalorder %s25, 7
      %p43 = por %p41, %p42
      %p44 = scmp.ne.s32.totalorder %s33, %s34
      %p45 = scmp.eq.s32.totalorder %s25, 0
      %p46 = por %p44, %p45
      %p47 = scmp.ne.s32.totalorder %s33, %s34
      %p48 = scmp.eq.s32.totalorder %s26, 7
      %p49 = por %p47, %p48
      %p51 = scmp.ne.s32.totalorder %s34, %s50
      %p52 = scmp.eq.s32.totalorder %s26, 0
      %p53 = por %p51, %p52
      %s54 = ssub.s32 %s20, %s27
      %p55 = scmp.eq.s32.totalorder %s54, 0
      %s57 = sadd.s32 %s56, 1
      %s58 = scalar_select %p55, %s56, %s57
      %p61 = pneg %p55
      %p62 = scmp.eq.s32.totalorder %s20, 7
      %p63 = por %p61, %p62
      %p64 = scmp.ne.s32.totalorder %s56, %s59
      %p65 = scmp.eq.s32.totalorder %s20, 0
      %p66 = por %p64, %p65
      %p67 = scmp.ne.s32.totalorder %s56, %s59
      %p68 = scmp.eq.s32.totalorder %s25, 7
      %p69 = por %p67, %p68
      %p70 = scmp.ne.s32.totalorder %s59, %s60
      %p71 = scmp.eq.s32.totalorder %s25, 0
      %p72 = por %p70, %p71
      %p73 = scmp.ne.s32.totalorder %s59, %s60
      %p74 = scmp.eq.s32.totalorder %s26, 7
      %p75 = por %p73, %p74
      %p77 = scmp.ne.s32.totalorder %s60, %s76
      %p78 = scmp.eq.s32.totalorder %s26, 0
      %p79 = por %p77, %p78
      %s81 = sadd.s32 %s80, 1
      %p84 = scmp.eq.s32.totalorder %s20, 7
      %p85 = scmp.ne.s32.totalorder %s80, %s82
      %p86 = scmp.eq.s32.totalorder %s20, 0
      %p87 = por %p85, %p86
      %p88 = scmp.ne.s32.totalorder %s80, %s82
      %p89 = scmp.eq.s32.totalorder %s25, 7
      %p90 = por %p88, %p89
      %p91 = scmp.ne.s32.totalorder %s82, %s83
      %p92 = scmp.eq.s32.totalorder %s25, 0
      %p93 = por %p91, %p92
      %p94 = scmp.ne.s32.totalorder %s82, %s83
      %p95 = scmp.eq.s32.totalorder %s26, 7
      %p96 = por %p94, %p95
      %p98 = scmp.ne.s32.totalorder %s83, %s97
      %p99 = scmp.eq.s32.totalorder %s26, 0
      %p100 = por %p98, %p99
      %s102 = sadd.s32 %s101, 1
      %p105 = scmp.eq.s32.totalorder %s20, 7
      %p106 = scmp.ne.s32.totalorder %s101, %s103
      %p107 = scmp.eq.s32.totalorder %s20, 0
      %p108 = por %p106, %p107
      %p109 = scmp.ne.s32.totalorder %s101, %s103
      %p110 = scmp.eq.s32.totalorder %s25, 7
      %p111 = por %p109, %p110
      %p112 = scmp.ne.s32.totalorder %s103, %s104
      %p113 = scmp.eq.s32.totalorder %s25, 0
      %p114 = por %p112, %p113
      %p115 = scmp.ne.s32.totalorder %s103, %s104
      %p116 = scmp.eq.s32.totalorder %s26, 7
      %p117 = por %p115, %p116
      %p119 = scmp.ne.s32.totalorder %s104, %s118
      %p120 = scmp.eq.s32.totalorder %s26, 0
      %p121 = por %p119, %p120
      %s122 = ssub.s32 %s20, %s27
      %p123 = scmp.eq.s32.totalorder %s122, 0
      %s125 = sadd.s32 %s124, 1
      %s126 = scalar_select %p123, %s124, %s125
      %p129 = pneg %p123
      %p130 = scmp.eq.s32.totalorder %s20, 7
      %p131 = por %p129, %p130
      %p132 = scmp.ne.s32.totalorder %s124, %s127
      %p133 = scmp.eq.s32.totalorder %s20, 0
      %p134 = por %p132, %p133
      %p135 = scmp.ne.s32.totalorder %s124, %s127
      %p136 = scmp.eq.s32.totalorder %s25, 7
      %p137 = por %p135, %p136
      %p138 = scmp.ne.s32.totalorder %s127, %s128
      %p139 = scmp.eq.s32.totalorder %s25, 0
      %p140 = por %p138, %p139
      %p141 = scmp.ne.s32.totalorder %s127, %s128
      %p142 = scmp.eq.s32.totalorder %s26, 7
      %p143 = por %p141, %p142
      %p145 = scmp.ne.s32.totalorder %s128, %s144
      %p146 = scmp.eq.s32.totalorder %s26, 0
      %p147 = por %p145, %p146
      %p148 = scmp.le.s32.totalorder 1, %s20
      %p149 = scmp.lt.s32.totalorder %s20, 9
      %p150 = pnand %p148, %p149
      %p151 = pneg %p150
      // Predicated region
      $region9: #{qgin_fp_forward.1} parent=5 // pred_check
        _
      $region10: #{qgin_fp_forward.1} parent=5 // pred_check_branch
        %153 = sbr.rel (%p150) target = $region12
      $region11: #{qgin_fp_forward.1} parent=5 // pred_region
        %s154 = ssub.s32 %s20, 1
        // Predicated region
        $region13: #{qgin_fp_forward.1} parent=11 // pred_check
          %p155 = pneg %p93
        $region14: #{qgin_fp_forward.1} parent=11 // pred_check_branch
          %157 = sbr.rel (%p155) target = $region16
        $region15: #{qgin_fp_forward.1} parent=11 // pred_region
          %s159 = ssub.s32 6144, 6144
          %160 = vsyncadd [#allocation6], %s159
          %s161 = sshll.u32 [#allocation7], 4
          %s162 = int_to_ptr.vmem [resolvable:$true] %s161
          %167 = dma.hbm_to_vmem [thread:$0]  %s2, 6144, %s162, [#allocation6], 64, 64, 4
        $region16: #{qgin_fp_forward.1} parent=11 // pred_fallthru
          _
        // Predicated region
        $region17: #{qgin_fp_forward.1} parent=11 // pred_check
          %p168 = pneg %p114
        $region18: #{qgin_fp_forward.1} parent=11 // pred_check_branch
          %170 = sbr.rel (%p168) target = $region20
        $region19: #{qgin_fp_forward.1} parent=11 // pred_region
          %s172 = ssub.s32 192, 192
          %173 = vsyncadd [#allocation9], %s172
          %s174 = sshll.u32 [#allocation8], 4
          %s175 = int_to_ptr.vmem [resolvable:$true] %s174
          %180 = dma.hbm_to_vmem [thread:$0]  %s3, 192, %s175, [#allocation9], 16, 16, 1
        $region20: #{qgin_fp_forward.1} parent=11 // pred_fallthru
          _
      $region12: #{qgin_fp_forward.1} parent=5 // pred_fallthru
        _
      %p181 = scmp.lt.s32.totalorder %s20, 8
      // Predicated region
      $region21: #{qgin_fp_forward.1} parent=5 // pred_check
        %p182 = pneg %p181
      $region22: #{qgin_fp_forward.1} parent=5 // pred_check_branch
        %184 = sbr.rel (%p182) target = $region24
      $region23: #{qgin_fp_forward.1} parent=5 // pred_region
        // Predicated region
        $region25: #{qgin_fp_forward.1} parent=23 // pred_check
          %p185 = pneg %p40
        $region26: #{qgin_fp_forward.1} parent=23 // pred_check_branch
          %187 = sbr.rel (%p185) target = $region28
        $region27: #{qgin_fp_forward.1} parent=23 // pred_region
          %s188 = sand.u32 %s30, 1
          %s189 = scalar_lea.sflag [#allocation3], %s188
          %s190 = sand.u32 %s30, 1
          %s191 = smul.addr %s190, 8
          %s192 = scalar_lea.vmem [#allocation2], %s191
          %s194 = ssub.s32 128, 128
          %195 = vsyncadd %s189, %s194
          %s196 = smul.addr %s20, 2
          %s197 = smul.addr %s196, 64
          %s198 = scalar_lea.hbm %s0, %s197
          %s199 = sshll.u32 %s192, 4
          %s200 = int_to_ptr.vmem [resolvable:$true] %s199
          %205 = dma.hbm_to_vmem [thread:$0]  %s198, 128, %s200, %s189, 64, 64, 4
        $region28: #{qgin_fp_forward.1} parent=23 // pred_fallthru
          _
        // Predicated region
        $region29: #{qgin_fp_forward.1} parent=23 // pred_check
          %p206 = pneg %p66
        $region30: #{qgin_fp_forward.1} parent=23 // pred_check_branch
          %208 = sbr.rel (%p206) target = $region32
        $region31: #{qgin_fp_forward.1} parent=23 // pred_region
          %s209 = sand.u32 %s20, 1
          %s210 = scalar_lea.sflag [#allocation6], %s209
          %s211 = sand.u32 %s56, 1
          %s212 = smul.addr %s211, 8
          %s213 = scalar_lea.vmem [#allocation5], %s212
          %s215 = ssub.s32 128, 128
          %216 = vsyncadd %s210, %s215
          %s217 = smul.addr %s20, 2
          %s218 = smul.addr %s217, 64
          %s219 = scalar_lea.hbm %s1, %s218
          %s220 = sshll.u32 %s213, 4
          %s221 = int_to_ptr.vmem [resolvable:$true] %s220
          %226 = dma.hbm_to_vmem [thread:$0]  %s219, 128, %s221, %s210, 64, 64, 4
        $region32: #{qgin_fp_forward.1} parent=23 // pred_fallthru
          _
      $region24: #{qgin_fp_forward.1} parent=5 // pred_fallthru
        _
      %p227 = scmp.le.s32.totalorder 1, %s20
      %p228 = scmp.lt.s32.totalorder %s20, 9
      %p229 = pnand %p227, %p228
      %p230 = pneg %p229
      // Predicated region
      $region33: #{qgin_fp_forward.1} parent=5 // pred_check
        _
      $region34: #{qgin_fp_forward.1} parent=5 // pred_check_branch
        %232 = sbr.rel (%p229) target = $region36
      $region35: #{qgin_fp_forward.1} parent=5 // pred_region
        %s233 = ssub.s32 %s20, 1
        %s234 = sand.u32 %s33, 1
        %s235 = scalar_lea.sflag [#allocation3], %s234
        %s236 = sand.u32 %s33, 1
        %s237 = smul.addr %s236, 8
        %s238 = scalar_lea.vmem [#allocation2], %s237
        // Predicated region
        $region37: #{qgin_fp_forward.1} parent=35 // pred_check
          %p239 = pneg %p46
        $region38: #{qgin_fp_forward.1} parent=35 // pred_check_branch
          %241 = sbr.rel (%p239) target = $region40
        $region39: #{qgin_fp_forward.1} parent=35 // pred_region
          %242 = dma.done %s235, 128
        $region40: #{qgin_fp_forward.1} parent=35 // pred_fallthru
          _
        %s243 = sand.u32 %s25, 1
        %s244 = scalar_lea.sflag [#allocation6], %s243
        %s245 = sand.u32 %s59, 1
        %s246 = smul.addr %s245, 8
        %s247 = scalar_lea.vmem [#allocation5], %s246
        // Predicated region
        $region41: #{qgin_fp_forward.1} parent=35 // pred_check
          %p248 = pneg %p72
        $region42: #{qgin_fp_forward.1} parent=35 // pred_check_branch
          %250 = sbr.rel (%p248) target = $region44
        $region43: #{qgin_fp_forward.1} parent=35 // pred_region
          %251 = dma.done %s244, 128
        $region44: #{qgin_fp_forward.1} parent=35 // pred_fallthru
          _
        // Predicated region
        $region45: #{qgin_fp_forward.1} parent=35 // pred_check
          %p252 = pneg %p93
        $region46: #{qgin_fp_forward.1} parent=35 // pred_check_branch
          %254 = sbr.rel (%p252) target = $region48
        $region47: #{qgin_fp_forward.1} parent=35 // pred_region
          %255 = dma.done [#allocation6], 6144
        $region48: #{qgin_fp_forward.1} parent=35 // pred_fallthru
          _
        // Predicated region
        $region49: #{qgin_fp_forward.1} parent=35 // pred_check
          %p256 = pneg %p114
        $region50: #{qgin_fp_forward.1} parent=35 // pred_check_branch
          %258 = sbr.rel (%p256) target = $region52
        $region51: #{qgin_fp_forward.1} parent=35 // pred_region
          %259 = dma.done [#allocation9], 192
        $region52: #{qgin_fp_forward.1} parent=35 // pred_fallthru
          _
        %s260 = sand.u32 %s33, 1
        %s261 = scalar_lea.sflag [#allocation3], %s260
        %s262 = sand.u32 %s33, 1
        %s263 = smul.addr %s262, 8
        %s264 = scalar_lea.vmem [#allocation2], %s263
        %p265 = pneg %p46
        %p266 = pneg %p43
        %s267 = sand.u32 %s25, 1
        %s268 = scalar_lea.sflag [#allocation6], %s267
        %s269 = sand.u32 %s59, 1
        %s270 = smul.addr %s269, 8
        %s271 = scalar_lea.vmem [#allocation5], %s270
        %p272 = pneg %p72
        %p273 = pneg %p69
        %p274 = pneg %p93
        %p275 = pneg %p90
        %p276 = pneg %p114
        %p277 = pneg %p111
        %p278 = pneg %p140
        %p279 = pneg %p137
        %s280 = sand.u32 %s127, 1
        %s281 = scalar_lea.sflag [#allocation4], %s280
        %s282 = sand.u32 %s127, 1
        %s283 = smul.addr %s282, 16
        %s284 = scalar_lea.vmem [#allocation10], %s283
        %v286 = vld [vmem:[%s238] sm:$0xf]
        %v287 = vld [vmem:[%s238 + $0x4] sm:$0xf]
        %v288 = vld [vmem:[%s247] sm:$0xf]
        %v289 = vld [vmem:[%s247 + $0x4] sm:$0xf]
        %v292 = vunpack.c.l.b16 %v288
        %v293 = vunpack.c.l.b16 %v289
        %v294 = vpack.c.b16 %v293, %v292
        loop: start=0, step=1, limit=2
        $region53: #{qgin_fp_forward.1} parent=35 // loop_pre_header
          _
        $region54: #{qgin_fp_forward.1} parent=35 // loop_header
          %s297 = sphi 0, %s301
          %p298 = scmp.ge.s32.totalorder %s297, 2
          %v302 = vphi %v294, %v673
        $region55: #{qgin_fp_forward.1} parent=35 // loop_header_branch
          %300 = sbr.rel (%p298) target = $region59
        $region56: #{qgin_fp_forward.1} parent=35 // loop_body
          %v305 = vunpack.c.l.b16 %v286
          %v306 = vunpack.c.l.b16 %v287
          %v307 = vpack.c.b16 %v306, %v305
          %vm308 = vcmask 130048
          %v310 = vsel %vm308, %v307, 0
          %312 = vmatprep.subr.bf16.mxu0 0
          %313 = vmatpush1.bf16.msra.mxu0 %v302
          %314 = vmatprep.subr.bf16.mxu0 0
          %315 = vmatpush1.bf16.msra.mxu0 0
          %316 = vmatprep.subr.bf16.mxu0 0
          %317 = vmatpush1.bf16.msra.mxu0 0
          %318 = vmatprep.subr.bf16.mxu0 0
          %319 = vmatpush1.bf16.msra.mxu0 0
          %320 = vmatprep.subr.bf16.mxu0 0
          %321 = vmatpush1.bf16.msra.mxu0 0
          %322 = vmatprep.subr.bf16.mxu0 0
          %323 = vmatpush1.bf16.msra.mxu0 0
          %324 = vmatprep.subr.bf16.mxu0 0
          %325 = vmatpush1.bf16.msra.mxu0 0
          %326 = vmatprep.subr.bf16.mxu0 0
          %327 = vmatpush1.bf16.msra.mxu0 0
          %328 = vmatprep.subr.bf16.mxu0 0
          %329 = vmatpush1.bf16.msra.mxu0 0
          %330 = vmatprep.subr.bf16.mxu0 0
          %331 = vmatpush1.bf16.msra.mxu0 0
          %332 = vmatprep.subr.bf16.mxu0 0
          %333 = vmatpush1.bf16.msra.mxu0 0
          %334 = vmatprep.subr.bf16.mxu0 0
          %335 = vmatpush1.bf16.msra.mxu0 0
          %336 = vmatprep.subr.bf16.mxu0 0
          %337 = vmatpush1.bf16.msra.mxu0 0
          %338 = vmatprep.subr.bf16.mxu0 0
          %339 = vmatpush1.bf16.msra.mxu0 0
          %340 = vmatprep.subr.bf16.mxu0 0
          %341 = vmatpush1.bf16.msra.mxu0 0
          %342 = vmatprep.subr.bf16.mxu0 0
          %343 = vmatpush1.bf16.msra.mxu0 0
          %344 = vmatprep.mubr.bf16.mxu0 0
          %345 = vmatmul.mubr.bf16.gmra.mrb[0].mxu0 %v310
          %v346 = vpop.f32.mrb[0].mxu0
          %v347 = vadd.f32 0.0, %v346
          %v348 = vpop.f32.mrb[0].mxu0
          %v349 = vpop.f32.mrb[0].mxu0
          %v350 = vadd.f32 0.0, %v349
          %v351 = vpop.f32.mrb[0].mxu0
          %352 = vdwg.mxu0
          %v353 = vpack.c.bf16 %v350, %v347
          %s354 = smul.u32 %s297, 2
          %s355 = smul.u32 %s354, 16
          %s356 = smul.addr %s355, 4
          %s357 = scalar_lea.vmem [#allocation7], %s356
          %v358 = vld [vmem:[%s357] sm:$0xf]
          %v359 = vld [vmem:[%s357 + $0x4] sm:$0xf]
          %v360 = vld [vmem:[%s357 + $0x8] sm:$0xf]
          %v361 = vld [vmem:[%s357 + $0xc] sm:$0xf]
          %v362 = vld [vmem:[%s357 + $0x10] sm:$0xf]
          %v363 = vld [vmem:[%s357 + $0x14] sm:$0xf]
          %v364 = vld [vmem:[%s357 + $0x18] sm:$0xf]
          %v365 = vld [vmem:[%s357 + $0x1c] sm:$0xf]
          %v366 = vld [vmem:[%s357 + $0x20] sm:$0xf]
          %v367 = vld [vmem:[%s357 + $0x24] sm:$0xf]
          %v368 = vld [vmem:[%s357 + $0x28] sm:$0xf]
          %v369 = vld [vmem:[%s357 + $0x2c] sm:$0xf]
          %v370 = vld [vmem:[%s357 + $0x30] sm:$0xf]
          %v371 = vld [vmem:[%s357 + $0x34] sm:$0xf]
          %v372 = vld [vmem:[%s357 + $0x38] sm:$0xf]
          %v373 = vld [vmem:[%s357 + $0x3c] sm:$0xf]
          %v390 = vunpack.c.l.b16 %v358
          %v391 = vunpack.c.l.b16 %v359
          %v392 = vunpack.c.l.b16 %v360
          %v393 = vunpack.c.l.b16 %v361
          %v394 = vunpack.c.l.b16 %v362
          %v395 = vunpack.c.l.b16 %v363
          %v396 = vunpack.c.l.b16 %v364
          %v397 = vunpack.c.l.b16 %v365
          %v398 = vunpack.c.l.b16 %v366
          %v399 = vunpack.c.l.b16 %v367
          %v400 = vunpack.c.l.b16 %v368
          %v401 = vunpack.c.l.b16 %v369
          %v402 = vunpack.c.l.b16 %v370
          %v403 = vunpack.c.l.b16 %v371
          %v404 = vunpack.c.l.b16 %v372
          %v405 = vunpack.c.l.b16 %v373
          %v406 = vpack.c.b16 %v391, %v390
          %v407 = vpack.c.b16 %v393, %v392
          %v408 = vpack.c.b16 %v395, %v394
          %v409 = vpack.c.b16 %v397, %v396
          %v410 = vpack.c.b16 %v399, %v398
          %v411 = vpack.c.b16 %v401, %v400
          %v412 = vpack.c.b16 %v403, %v402
          %v413 = vpack.c.b16 %v405, %v404
          %422 = vmatprep.subr.bf16.mxu0 0
          %423 = vmatpush1.bf16.msra.mxu0 %v406
          %424 = vmatprep.subr.bf16.mxu0 0
          %425 = vmatpush1.bf16.msra.mxu0 %v407
          %426 = vmatprep.subr.bf16.mxu0 0
          %427 = vmatpush1.bf16.msra.mxu0 %v408
          %428 = vmatprep.subr.bf16.mxu0 0
          %429 = vmatpush1.bf16.msra.mxu0 %v409
          %430 = vmatprep.subr.bf16.mxu0 0
          %431 = vmatpush1.bf16.msra.mxu0 %v410
          %432 = vmatprep.subr.bf16.mxu0 0
          %433 = vmatpush1.bf16.msra.mxu0 %v411
          %434 = vmatprep.subr.bf16.mxu0 0
          %435 = vmatpush1.bf16.msra.mxu0 %v412
          %436 = vmatprep.subr.bf16.mxu0 0
          %437 = vmatpush1.bf16.msra.mxu0 %v413
          %438 = vmatprep.subr.bf16.mxu0 0
          %439 = vmatpush1.bf16.msra.mxu0 0
          %440 = vmatprep.subr.bf16.mxu0 0
          %441 = vmatpush1.bf16.msra.mxu0 0
          %442 = vmatprep.subr.bf16.mxu0 0
          %443 = vmatpush1.bf16.msra.mxu0 0
          %444 = vmatprep.subr.bf16.mxu0 0
          %445 = vmatpush1.bf16.msra.mxu0 0
          %446 = vmatprep.subr.bf16.mxu0 0
          %447 = vmatpush1.bf16.msra.mxu0 0
          %448 = vmatprep.subr.bf16.mxu0 0
          %449 = vmatpush1.bf16.msra.mxu0 0
          %450 = vmatprep.subr.bf16.mxu0 0
          %451 = vmatpush1.bf16.msra.mxu0 0
          %452 = vmatprep.subr.bf16.mxu0 0
          %453 = vmatpush1.bf16.msra.mxu0 0
          %454 = vmatprep.mubr.bf16.mxu0 0
          %455 = vmatmul.mubr.bf16.gmra.mrb[0].mxu0 %v353
          %v456 = vpop.f32.mrb[0].mxu0
          %v457 = vadd.f32 0.0, %v456
          %v458 = vpop.f32.mrb[0].mxu0
          %v459 = vpop.f32.mrb[0].mxu0
          %v460 = vadd.f32 0.0, %v459
          %v461 = vpop.f32.mrb[0].mxu0
          %462 = vdwg.mxu0
          %s463 = smul.u32 %s297, 4
          %s464 = scalar_lea.vmem [#allocation8], %s463
          %v465 = vld [vmem:[%s464] sm:$0x1]
          %s466 = sadd.s32 %s463, 1
          %s467 = scalar_lea.vmem [#allocation8], %s466
          %v468 = vld [vmem:[%s467] sm:$0x1]
          %v469 = vadd.f32 %v457, %v460
          %v470 = vrot.slane %v469, 4
          %v471 = vadd.f32 %v469, %v470
          %v472 = vrot.slane %v471, 2
          %v473 = vadd.f32 %v471, %v472
          %v474 = vrot.slane %v473, 1
          %v475 = vadd.f32 %v473, %v474
          %v476 = vmul.f32 %v475, 0.0625
          %v477 = vmul.f32 %v457, %v457
          %v478 = vmul.f32 %v460, %v460
          %v479 = vadd.f32 %v477, %v478
          %v480 = vrot.slane %v479, 4
          %v481 = vadd.f32 %v479, %v480
          %v482 = vrot.slane %v481, 2
          %v483 = vadd.f32 %v481, %v482
          %v484 = vrot.slane %v483, 1
          %v485 = vadd.f32 %v483, %v484
          %v486 = vmul.f32 %v485, 0.0625
          %v487 = vmul.f32 %v476, %v476
          %v488 = vsub.f32 %v486, %v487
          %v489 = vmax.f32 %v488, 0.0
          %v490 = vadd.f32 %v489, 1e-05
          %v491 = vrsqrt.pop %v490
          %v492 = vmul.f32 %v465, %v491
          %v494 = vlaneseq
          %v495 = vshrl.u32 %v494, 7
          %v496 = vsub.s32 0, %v495
          %v497 = vrot.slane %v492, %v496
          %v499 = vmul.f32 %v457, %v497
          %v500 = vmul.f32 %v460, %v497
          %v501 = vmul.f32 %v476, %v492
          %v502 = vsub.f32 %v468, %v501
          %v504 = vlaneseq
          %v505 = vshrl.u32 %v504, 7
          %v506 = vsub.s32 0, %v505
          %v507 = vrot.slane %v502, %v506
          %v509 = vadd.f32 %v499, %v507
          %v510 = vadd.f32 %v500, %v507
          %v511 = vmax.f32 %v509, 0.0
          %v512 = vmax.f32 %v510, 0.0
          %v513 = vpack.c.bf16 %v512, %v511
          %s514 = sadd.s32 %s354, 1
          %s515 = smul.u32 %s514, 16
          %s516 = smul.addr %s515, 4
          %s517 = scalar_lea.vmem [#allocation7], %s516
          %v518 = vld [vmem:[%s517] sm:$0xf]
          %v519 = vld [vmem:[%s517 + $0x4] sm:$0xf]
          %v520 = vld [vmem:[%s517 + $0x8] sm:$0xf]
          %v521 = vld [vmem:[%s517 + $0xc] sm:$0xf]
          %v522 = vld [vmem:[%s517 + $0x10] sm:$0xf]
          %v523 = vld [vmem:[%s517 + $0x14] sm:$0xf]
          %v524 = vld [vmem:[%s517 + $0x18] sm:$0xf]
          %v525 = vld [vmem:[%s517 + $0x1c] sm:$0xf]
          %v526 = vld [vmem:[%s517 + $0x20] sm:$0xf]
          %v527 = vld [vmem:[%s517 + $0x24] sm:$0xf]
          %v528 = vld [vmem:[%s517 + $0x28] sm:$0xf]
          %v529 = vld [vmem:[%s517 + $0x2c] sm:$0xf]
          %v530 = vld [vmem:[%s517 + $0x30] sm:$0xf]
          %v531 = vld [vmem:[%s517 + $0x34] sm:$0xf]
          %v532 = vld [vmem:[%s517 + $0x38] sm:$0xf]
          %v533 = vld [vmem:[%s517 + $0x3c] sm:$0xf]
          %v550 = vunpack.c.l.b16 %v518
          %v551 = vunpack.c.l.b16 %v519
          %v552 = vunpack.c.l.b16 %v520
          %v553 = vunpack.c.l.b16 %v521
          %v554 = vunpack.c.l.b16 %v522
          %v555 = vunpack.c.l.b16 %v523
          %v556 = vunpack.c.l.b16 %v524
          %v557 = vunpack.c.l.b16 %v525
          %v558 = vunpack.c.l.b16 %v526
          %v559 = vunpack.c.l.b16 %v527
          %v560 = vunpack.c.l.b16 %v528
          %v561 = vunpack.c.l.b16 %v529
          %v562 = vunpack.c.l.b16 %v530
          %v563 = vunpack.c.l.b16 %v531
          %v564 = vunpack.c.l.b16 %v532
          %v565 = vunpack.c.l.b16 %v533
          %v566 = vpack.c.b16 %v551, %v550
          %v567 = vpack.c.b16 %v553, %v552
          %v568 = vpack.c.b16 %v555, %v554
          %v569 = vpack.c.b16 %v557, %v556
          %v570 = vpack.c.b16 %v559, %v558
          %v571 = vpack.c.b16 %v561, %v560
          %v572 = vpack.c.b16 %v563, %v562
          %v573 = vpack.c.b16 %v565, %v564
          %582 = vmatprep.subr.bf16.mxu0 0
          %583 = vmatpush1.bf16.msra.mxu0 %v566
          %584 = vmatprep.subr.bf16.mxu0 0
          %585 = vmatpush1.bf16.msra.mxu0 %v567
          %586 = vmatprep.subr.bf16.mxu0 0
          %587 = vmatpush1.bf16.msra.mxu0 %v568
          %588 = vmatprep.subr.bf16.mxu0 0
          %589 = vmatpush1.bf16.msra.mxu0 %v569
          %590 = vmatprep.subr.bf16.mxu0 0
          %591 = vmatpush1.bf16.msra.mxu0 %v570
          %592 = vmatprep.subr.bf16.mxu0 0
          %593 = vmatpush1.bf16.msra.mxu0 %v571
          %594 = vmatprep.subr.bf16.mxu0 0
          %595 = vmatpush1.bf16.msra.mxu0 %v572
          %596 = vmatprep.subr.bf16.mxu0 0
          %597 = vmatpush1.bf16.msra.mxu0 %v573
          %598 = vmatprep.subr.bf16.mxu0 0
          %599 = vmatpush1.bf16.msra.mxu0 0
          %600 = vmatprep.subr.bf16.mxu0 0
          %601 = vmatpush1.bf16.msra.mxu0 0
          %602 = vmatprep.subr.bf16.mxu0 0
          %603 = vmatpush1.bf16.msra.mxu0 0
          %604 = vmatprep.subr.bf16.mxu0 0
          %605 = vmatpush1.bf16.msra.mxu0 0
          %606 = vmatprep.subr.bf16.mxu0 0
          %607 = vmatpush1.bf16.msra.mxu0 0
          %608 = vmatprep.subr.bf16.mxu0 0
          %609 = vmatpush1.bf16.msra.mxu0 0
          %610 = vmatprep.subr.bf16.mxu0 0
          %611 = vmatpush1.bf16.msra.mxu0 0
          %612 = vmatprep.subr.bf16.mxu0 0
          %613 = vmatpush1.bf16.msra.mxu0 0
          %614 = vmatprep.mubr.bf16.mxu0 0
          %615 = vmatmul.mubr.bf16.gmra.mrb[0].mxu0 %v513
          %v616 = vpop.f32.mrb[0].mxu0
          %v617 = vadd.f32 0.0, %v616
          %v618 = vpop.f32.mrb[0].mxu0
          %v619 = vpop.f32.mrb[0].mxu0
          %v620 = vadd.f32 0.0, %v619
          %v621 = vpop.f32.mrb[0].mxu0
          %622 = vdwg.mxu0
          %s623 = sadd.s32 %s463, 2
          %s624 = scalar_lea.vmem [#allocation8], %s623
          %v625 = vld [vmem:[%s624] sm:$0x1]
          %s626 = sadd.s32 %s463, 3
          %s627 = scalar_lea.vmem [#allocation8], %s626
          %v628 = vld [vmem:[%s627] sm:$0x1]
          %v629 = vadd.f32 %v617, %v620
          %v630 = vrot.slane %v629, 4
          %v631 = vadd.f32 %v629, %v630
          %v632 = vrot.slane %v631, 2
          %v633 = vadd.f32 %v631, %v632
          %v634 = vrot.slane %v633, 1
          %v635 = vadd.f32 %v633, %v634
          %v636 = vmul.f32 %v635, 0.0625
          %v637 = vmul.f32 %v617, %v617
          %v638 = vmul.f32 %v620, %v620
          %v639 = vadd.f32 %v637, %v638
          %v640 = vrot.slane %v639, 4
          %v641 = vadd.f32 %v639, %v640
          %v642 = vrot.slane %v641, 2
          %v643 = vadd.f32 %v641, %v642
          %v644 = vrot.slane %v643, 1
          %v645 = vadd.f32 %v643, %v644
          %v646 = vmul.f32 %v645, 0.0625
          %v647 = vmul.f32 %v636, %v636
          %v648 = vsub.f32 %v646, %v647
          %v649 = vmax.f32 %v648, 0.0
          %v650 = vadd.f32 %v649, 1e-05
          %v651 = vrsqrt.pop %v650
          %v652 = vmul.f32 %v625, %v651
          %v654 = vlaneseq
          %v655 = vshrl.u32 %v654, 7
          %v656 = vsub.s32 0, %v655
          %v657 = vrot.slane %v652, %v656
          %v659 = vmul.f32 %v617, %v657
          %v660 = vmul.f32 %v620, %v657
          %v661 = vmul.f32 %v636, %v652
          %v662 = vsub.f32 %v628, %v661
          %v664 = vlaneseq
          %v665 = vshrl.u32 %v664, 7
          %v666 = vsub.s32 0, %v665
          %v667 = vrot.slane %v662, %v666
          %v669 = vadd.f32 %v659, %v667
          %v670 = vadd.f32 %v660, %v667
          %v671 = vmax.f32 %v669, 0.0
          %v672 = vmax.f32 %v670, 0.0
          %v673 = vpack.c.bf16 %v672, %v671
        $region57: #{qgin_fp_forward.1} parent=35 // loop_footer
          %s301 = sadd.s32 1, %s297
        $region58: #{qgin_fp_forward.1} parent=35 // loop_footer_branch
          %296 = sbr.rel target = $region54
        $region59: #{qgin_fp_forward.1} parent=35 // loop_exit
          _
        %v676 = vunpack.c.l.b16 %v286
        %v677 = vunpack.c.l.b16 %v287
        %v678 = vpack.c.b16 %v677, %v676
        %vm679 = vcmask 130048
        %v681 = vsel %vm679, %v678, 0
        %683 = vmatprep.subr.bf16.mxu0 0
        %684 = vmatpush1.bf16.msra.mxu0 %v302
        %685 = vmatprep.subr.bf16.mxu0 0
        %686 = vmatpush1.bf16.msra.mxu0 0
        %687 = vmatprep.subr.bf16.mxu0 0
        %688 = vmatpush1.bf16.msra.mxu0 0
        %689 = vmatprep.subr.bf16.mxu0 0
        %690 = vmatpush1.bf16.msra.mxu0 0
        %691 = vmatprep.subr.bf16.mxu0 0
        %692 = vmatpush1.bf16.msra.mxu0 0
        %693 = vmatprep.subr.bf16.mxu0 0
        %694 = vmatpush1.bf16.msra.mxu0 0
        %695 = vmatprep.subr.bf16.mxu0 0
        %696 = vmatpush1.bf16.msra.mxu0 0
        %697 = vmatprep.subr.bf16.mxu0 0
        %698 = vmatpush1.bf16.msra.mxu0 0
        %699 = vmatprep.subr.bf16.mxu0 0
        %700 = vmatpush1.bf16.msra.mxu0 0
        %701 = vmatprep.subr.bf16.mxu0 0
        %702 = vmatpush1.bf16.msra.mxu0 0
        %703 = vmatprep.subr.bf16.mxu0 0
        %704 = vmatpush1.bf16.msra.mxu0 0
        %705 = vmatprep.subr.bf16.mxu0 0
        %706 = vmatpush1.bf16.msra.mxu0 0
        %707 = vmatprep.subr.bf16.mxu0 0
        %708 = vmatpush1.bf16.msra.mxu0 0
        %709 = vmatprep.subr.bf16.mxu0 0
        %710 = vmatpush1.bf16.msra.mxu0 0
        %711 = vmatprep.subr.bf16.mxu0 0
        %712 = vmatpush1.bf16.msra.mxu0 0
        %713 = vmatprep.subr.bf16.mxu0 0
        %714 = vmatpush1.bf16.msra.mxu0 0
        %715 = vmatprep.mubr.bf16.mxu0 0
        %716 = vmatmul.mubr.bf16.gmra.mrb[0].mxu0 %v681
        %v717 = vpop.f32.mrb[0].mxu0
        %v718 = vadd.f32 0.0, %v717
        %v719 = vpop.f32.mrb[0].mxu0
        %v720 = vpop.f32.mrb[0].mxu0
        %v721 = vadd.f32 0.0, %v720
        %v722 = vpop.f32.mrb[0].mxu0
        %723 = vdwg.mxu0
        %v724 = vpack.c.bf16 %v721, %v718
        %s725 = scalar_lea.vmem [#allocation7], 256
        %v726 = vld [vmem:[%s725] sm:$0xf]
        %v727 = vld [vmem:[%s725 + $0x4] sm:$0xf]
        %v728 = vld [vmem:[%s725 + $0x8] sm:$0xf]
        %v729 = vld [vmem:[%s725 + $0xc] sm:$0xf]
        %v730 = vld [vmem:[%s725 + $0x10] sm:$0xf]
        %v731 = vld [vmem:[%s725 + $0x14] sm:$0xf]
        %v732 = vld [vmem:[%s725 + $0x18] sm:$0xf]
        %v733 = vld [vmem:[%s725 + $0x1c] sm:$0xf]
        %v734 = vld [vmem:[%s725 + $0x20] sm:$0xf]
        %v735 = vld [vmem:[%s725 + $0x24] sm:$0xf]
        %v736 = vld [vmem:[%s725 + $0x28] sm:$0xf]
        %v737 = vld [vmem:[%s725 + $0x2c] sm:$0xf]
        %v738 = vld [vmem:[%s725 + $0x30] sm:$0xf]
        %v739 = vld [vmem:[%s725 + $0x34] sm:$0xf]
        %v740 = vld [vmem:[%s725 + $0x38] sm:$0xf]
        %v741 = vld [vmem:[%s725 + $0x3c] sm:$0xf]
        %v758 = vunpack.c.l.b16 %v726
        %v759 = vunpack.c.l.b16 %v727
        %v760 = vunpack.c.l.b16 %v728
        %v761 = vunpack.c.l.b16 %v729
        %v762 = vunpack.c.l.b16 %v730
        %v763 = vunpack.c.l.b16 %v731
        %v764 = vunpack.c.l.b16 %v732
        %v765 = vunpack.c.l.b16 %v733
        %v766 = vunpack.c.l.b16 %v734
        %v767 = vunpack.c.l.b16 %v735
        %v768 = vunpack.c.l.b16 %v736
        %v769 = vunpack.c.l.b16 %v737
        %v770 = vunpack.c.l.b16 %v738
        %v771 = vunpack.c.l.b16 %v739
        %v772 = vunpack.c.l.b16 %v740
        %v773 = vunpack.c.l.b16 %v741
        %v774 = vpack.c.b16 %v759, %v758
        %v775 = vpack.c.b16 %v761, %v760
        %v776 = vpack.c.b16 %v763, %v762
        %v777 = vpack.c.b16 %v765, %v764
        %v778 = vpack.c.b16 %v767, %v766
        %v779 = vpack.c.b16 %v769, %v768
        %v780 = vpack.c.b16 %v771, %v770
        %v781 = vpack.c.b16 %v773, %v772
        %790 = vmatprep.subr.bf16.mxu0 0
        %791 = vmatpush1.bf16.msra.mxu0 %v774
        %792 = vmatprep.subr.bf16.mxu0 0
        %793 = vmatpush1.bf16.msra.mxu0 %v775
        %794 = vmatprep.subr.bf16.mxu0 0
        %795 = vmatpush1.bf16.msra.mxu0 %v776
        %796 = vmatprep.subr.bf16.mxu0 0
        %797 = vmatpush1.bf16.msra.mxu0 %v777
        %798 = vmatprep.subr.bf16.mxu0 0
        %799 = vmatpush1.bf16.msra.mxu0 %v778
        %800 = vmatprep.subr.bf16.mxu0 0
        %801 = vmatpush1.bf16.msra.mxu0 %v779
        %802 = vmatprep.subr.bf16.mxu0 0
        %803 = vmatpush1.bf16.msra.mxu0 %v780
        %804 = vmatprep.subr.bf16.mxu0 0
        %805 = vmatpush1.bf16.msra.mxu0 %v781
        %806 = vmatprep.subr.bf16.mxu0 0
        %807 = vmatpush1.bf16.msra.mxu0 0
        %808 = vmatprep.subr.bf16.mxu0 0
        %809 = vmatpush1.bf16.msra.mxu0 0
        %810 = vmatprep.subr.bf16.mxu0 0
        %811 = vmatpush1.bf16.msra.mxu0 0
        %812 = vmatprep.subr.bf16.mxu0 0
        %813 = vmatpush1.bf16.msra.mxu0 0
        %814 = vmatprep.subr.bf16.mxu0 0
        %815 = vmatpush1.bf16.msra.mxu0 0
        %816 = vmatprep.subr.bf16.mxu0 0
        %817 = vmatpush1.bf16.msra.mxu0 0
        %818 = vmatprep.subr.bf16.mxu0 0
        %819 = vmatpush1.bf16.msra.mxu0 0
        %820 = vmatprep.subr.bf16.mxu0 0
        %821 = vmatpush1.bf16.msra.mxu0 0
        %822 = vmatprep.mubr.bf16.mxu0 0
        %823 = vmatmul.mubr.bf16.gmra.mrb[0].mxu0 %v724
        %v824 = vpop.f32.mrb[0].mxu0
        %v825 = vadd.f32 0.0, %v824
        %v826 = vpop.f32.mrb[0].mxu0
        %v827 = vpop.f32.mrb[0].mxu0
        %v828 = vadd.f32 0.0, %v827
        %v829 = vpop.f32.mrb[0].mxu0
        %830 = vdwg.mxu0
        %s831 = scalar_lea.vmem [#allocation8], 8
        %v832 = vld [vmem:[%s831] sm:$0x1]
        %s833 = scalar_lea.vmem [#allocation8], 9
        %v834 = vld [vmem:[%s833] sm:$0x1]
        %v835 = vadd.f32 %v825, %v828
        %v836 = vrot.slane %v835, 4
        %v837 = vadd.f32 %v835, %v836
        %v838 = vrot.slane %v837, 2
        %v839 = vadd.f32 %v837, %v838
        %v840 = vrot.slane %v839, 1
        %v841 = vadd.f32 %v839, %v840
        %v842 = vmul.f32 %v841, 0.0625
        %v843 = vmul.f32 %v825, %v825
        %v844 = vmul.f32 %v828, %v828
        %v845 = vadd.f32 %v843, %v844
        %v846 = vrot.slane %v845, 4
        %v847 = vadd.f32 %v845, %v846
        %v848 = vrot.slane %v847, 2
        %v849 = vadd.f32 %v847, %v848
        %v850 = vrot.slane %v849, 1
        %v851 = vadd.f32 %v849, %v850
        %v852 = vmul.f32 %v851, 0.0625
        %v853 = vmul.f32 %v842, %v842
        %v854 = vsub.f32 %v852, %v853
        %v855 = vmax.f32 %v854, 0.0
        %v856 = vadd.f32 %v855, 1e-05
        %v857 = vrsqrt.pop %v856
        %v858 = vmul.f32 %v832, %v857
        %v860 = vlaneseq
        %v861 = vshrl.u32 %v860, 7
        %v862 = vsub.s32 0, %v861
        %v863 = vrot.slane %v858, %v862
        %v865 = vmul.f32 %v825, %v863
        %v866 = vmul.f32 %v828, %v863
        %v867 = vmul.f32 %v842, %v858
        %v868 = vsub.f32 %v834, %v867
        %v870 = vlaneseq
        %v871 = vshrl.u32 %v870, 7
        %v872 = vsub.s32 0, %v871
        %v873 = vrot.slane %v868, %v872
        %v875 = vadd.f32 %v865, %v873
        %v876 = vadd.f32 %v866, %v873
        %v877 = vmax.f32 %v875, 0.0
        %v878 = vmax.f32 %v876, 0.0
        %v879 = vpack.c.bf16 %v878, %v877
        %s880 = scalar_lea.vmem [#allocation7], 320
        %v881 = vld [vmem:[%s880] sm:$0xf]
        %v882 = vld [vmem:[%s880 + $0x4] sm:$0xf]
        %v883 = vld [vmem:[%s880 + $0x8] sm:$0xf]
        %v884 = vld [vmem:[%s880 + $0xc] sm:$0xf]
        %v885 = vld [vmem:[%s880 + $0x10] sm:$0xf]
        %v886 = vld [vmem:[%s880 + $0x14] sm:$0xf]
        %v887 = vld [vmem:[%s880 + $0x18] sm:$0xf]
        %v888 = vld [vmem:[%s880 + $0x1c] sm:$0xf]
        %v889 = vld [vmem:[%s880 + $0x20] sm:$0xf]
        %v890 = vld [vmem:[%s880 + $0x24] sm:$0xf]
        %v891 = vld [vmem:[%s880 + $0x28] sm:$0xf]
        %v892 = vld [vmem:[%s880 + $0x2c] sm:$0xf]
        %v893 = vld [vmem:[%s880 + $0x30] sm:$0xf]
        %v894 = vld [vmem:[%s880 + $0x34] sm:$0xf]
        %v895 = vld [vmem:[%s880 + $0x38] sm:$0xf]
        %v896 = vld [vmem:[%s880 + $0x3c] sm:$0xf]
        %s897 = scalar_lea.vmem [#allocation8], 10
        %v898 = vld [vmem:[%s897] sm:$0x1]
        %v900 = vlaneseq
        %v901 = vshrl.u32 %v900, 7
        %v902 = vsub.s32 0, %v901
        %v903 = vrot.slane %v898, %v902
        %v921 = vunpack.c.l.b16 %v881
        %v922 = vunpack.c.l.b16 %v882
        %v923 = vunpack.c.l.b16 %v883
        %v924 = vunpack.c.l.b16 %v884
        %v925 = vunpack.c.l.b16 %v885
        %v926 = vunpack.c.l.b16 %v886
        %v927 = vunpack.c.l.b16 %v887
        %v928 = vunpack.c.l.b16 %v888
        %v929 = vunpack.c.l.b16 %v889
        %v930 = vunpack.c.l.b16 %v890
        %v931 = vunpack.c.l.b16 %v891
        %v932 = vunpack.c.l.b16 %v892
        %v933 = vunpack.c.l.b16 %v893
        %v934 = vunpack.c.l.b16 %v894
        %v935 = vunpack.c.l.b16 %v895
        %v936 = vunpack.c.l.b16 %v896
        %v937 = vpack.c.b16 %v922, %v921
        %v938 = vpack.c.b16 %v924, %v923
        %v939 = vpack.c.b16 %v926, %v925
        %v940 = vpack.c.b16 %v928, %v927
        %v941 = vpack.c.b16 %v930, %v929
        %v942 = vpack.c.b16 %v932, %v931
        %v943 = vpack.c.b16 %v934, %v933
        %v944 = vpack.c.b16 %v936, %v935
        %953 = vmatprep.subr.bf16.mxu0 0
        %954 = vmatpush1.bf16.msra.mxu0 %v937
        %955 = vmatprep.subr.bf16.mxu0 0
        %956 = vmatpush1.bf16.msra.mxu0 %v938
        %957 = vmatprep.subr.bf16.mxu0 0
        %958 = vmatpush1.bf16.msra.mxu0 %v939
        %959 = vmatprep.subr.bf16.mxu0 0
        %960 = vmatpush1.bf16.msra.mxu0 %v940
        %961 = vmatprep.subr.bf16.mxu0 0
        %962 = vmatpush1.bf16.msra.mxu0 %v941
        %963 = vmatprep.subr.bf16.mxu0 0
        %964 = vmatpush1.bf16.msra.mxu0 %v942
        %965 = vmatprep.subr.bf16.mxu0 0
        %966 = vmatpush1.bf16.msra.mxu0 %v943
        %967 = vmatprep.subr.bf16.mxu0 0
        %968 = vmatpush1.bf16.msra.mxu0 %v944
        %969 = vmatprep.subr.bf16.mxu0 0
        %970 = vmatpush1.bf16.msra.mxu0 0
        %971 = vmatprep.subr.bf16.mxu0 0
        %972 = vmatpush1.bf16.msra.mxu0 0
        %973 = vmatprep.subr.bf16.mxu0 0
        %974 = vmatpush1.bf16.msra.mxu0 0
        %975 = vmatprep.subr.bf16.mxu0 0
        %976 = vmatpush1.bf16.msra.mxu0 0
        %977 = vmatprep.subr.bf16.mxu0 0
        %978 = vmatpush1.bf16.msra.mxu0 0
        %979 = vmatprep.subr.bf16.mxu0 0
        %980 = vmatpush1.bf16.msra.mxu0 0
        %981 = vmatprep.subr.bf16.mxu0 0
        %982 = vmatpush1.bf16.msra.mxu0 0
        %983 = vmatprep.subr.bf16.mxu0 0
        %984 = vmatpush1.bf16.msra.mxu0 0
        %985 = vmatprep.mubr.bf16.mxu0 0
        %986 = vmatmul.mubr.bf16.gmra.mrb[0].mxu0 %v879
        %v987 = vpop.f32.mrb[0].mxu0
        %v988 = vadd.f32 %v903, %v987
        %v989 = vpop.f32.mrb[0].mxu0
        %v990 = vpop.f32.mrb[0].mxu0
        %v991 = vadd.f32 %v903, %v990
        %v992 = vpop.f32.mrb[0].mxu0
        %993 = vdwg.mxu0
        %v994 = vlaneseq
        %v995 = vand.u32 %v994, 127
        %vm996 = vcmp.lt.s32.totalorder %v995, 32
        %v997 = vsel %vm996, %v988, -inf
        %v998 = vsel %vm996, %v991, -inf
        %999 = vmax.xlane.f32.xlu0 %v997
        %v1000 = vpop.xlane.xlu0 %999
        %1001 = vmax.xlane.f32.xlu0 %v998
        %v1002 = vpop.xlane.xlu0 %1001
        %v1003 = vsub.f32 %v997, %v1000
        %v1004 = vsub.f32 %v998, %v1002
        %v1005 = vmul.f32 %v1003, 1.442695
        %v1006 = vpow.pop %v1005
        %v1007 = vmul.f32 %v1004, 1.442695
        %v1008 = vpow.pop %v1007
        %1009 = vadd.xlane.f32.xlu0 %v1006
        %v1010 = vpop.xlane.xlu0 %1009
        %1011 = vadd.xlane.f32.xlu0 %v1008
        %v1012 = vpop.xlane.xlu0 %1011
        %v1013 = vlog2.pop %v1010
        %v1014 = vmul.f32 %v1013, 0.6931472
        %v1015 = vlog2.pop %v1012
        %v1016 = vmul.f32 %v1015, 0.6931472
        %v1017 = vadd.f32 %v1014, %v1000
        %v1018 = vadd.f32 %v1016, %v1002
        %v1019 = vsub.f32 %v988, %v1017
        %v1020 = vsub.f32 %v991, %v1018
        %1021 = vst [vmem:[%s284] sm:$0xff] %v1019
        %1022 = vst [vmem:[%s284 + $0x8] sm:$0xff] %v1020
        %s1023 = sand.u32 %s127, 1
        %s1024 = scalar_lea.sflag [#allocation4], %s1023
        %s1025 = sand.u32 %s127, 1
        %s1026 = smul.addr %s1025, 16
        %s1027 = scalar_lea.vmem [#allocation10], %s1026
        // Predicated region
        $region60: #{qgin_fp_forward.1} parent=35 // pred_check
          %p1028 = pneg %p137
        $region61: #{qgin_fp_forward.1} parent=35 // pred_check_branch
          %1030 = sbr.rel (%p1028) target = $region63
        $region62: #{qgin_fp_forward.1} parent=35 // pred_region
          %s1032 = ssub.s32 256, 256
          %1033 = vsyncadd %s1024, %s1032
          %s1034 = smul.addr %s25, 2
          %s1035 = smul.addr %s1034, 128
          %s1036 = scalar_lea.hbm %s4, %s1035
          %s1037 = sshll.u32 %s1027, 4
          %s1038 = int_to_ptr.vmem [resolvable:$true] %s1037
          %1043 = dma.vmem_to_hbm [thread:$0]  %s1038, 256, %s1036, %s1024, 128, 128, 8
        $region63: #{qgin_fp_forward.1} parent=35 // pred_fallthru
          _
      $region36: #{qgin_fp_forward.1} parent=5 // pred_fallthru
        _
      %p1044 = scmp.le.s32.totalorder 2, %s20
      // Predicated region
      $region64: #{qgin_fp_forward.1} parent=5 // pred_check
        %p1045 = pneg %p1044
      $region65: #{qgin_fp_forward.1} parent=5 // pred_check_branch
        %1047 = sbr.rel (%p1045) target = $region67
      $region66: #{qgin_fp_forward.1} parent=5 // pred_region
        %s1048 = ssub.s32 %s20, 2
        // Predicated region
        $region68: #{qgin_fp_forward.1} parent=66 // pred_check
          %p1049 = pneg %p143
        $region69: #{qgin_fp_forward.1} parent=66 // pred_check_branch
          %1051 = sbr.rel (%p1049) target = $region71
        $region70: #{qgin_fp_forward.1} parent=66 // pred_region
          %s1052 = sand.u32 %s128, 1
          %s1053 = scalar_lea.sflag [#allocation4], %s1052
          %s1054 = sand.u32 %s128, 1
          %s1055 = smul.addr %s1054, 16
          %s1056 = scalar_lea.vmem [#allocation10], %s1055
          %1057 = dma.done %s1053, 256
        $region71: #{qgin_fp_forward.1} parent=66 // pred_fallthru
          _
      $region67: #{qgin_fp_forward.1} parent=5 // pred_fallthru
        _
    $region6: #{qgin_fp_forward.1} parent=1 // loop_footer
      %s24 = sadd.s32 1, %s20
    $region7: #{qgin_fp_forward.1} parent=1 // loop_footer_branch
      %19 = sbr.rel target = $region3
    $region8: #{qgin_fp_forward.1} parent=1 // loop_exit
      _
    %1058 = vsyncpa [#allocation3], 1
    %s1059 = scalar_lea.sflag [#allocation3], 1
    %1060 = vsyncpa %s1059, 1
    %1061 = vsyncpa [#allocation6], 1
    %s1062 = scalar_lea.sflag [#allocation6], 1
    %1063 = vsyncpa %s1062, 1
    %1064 = vsyncpa [#allocation9], 1
    %1065 = vsyncpa [#allocation4], 1
    %s1066 = scalar_lea.sflag [#allocation4], 1
    %1067 = vsyncpa %s1066, 1

</llo_original>
